<compile_context>
chip_gen: v7x
topology: tpu7x:2x2x1
jax: 0.10.0
libtpu: 0.0.40
codegen_flags: <defaults>
</compile_context>

<pallas_src>
import functools

import jax
import jax.numpy as jnp
from jax.experimental import pallas as pl
from jax.experimental.pallas import tpu as pltpu


def _round_up(x, m):
    return ((x + m - 1) // m) * m


def mlp_kernel(x_ref, w1_ref, b1_ref, w2_ref, b2_ref, o_ref):
    # x_ref : (tm, Ni_pad)      f32   VMEM (cast to bf16 here -> no wrapper cast pass)
    # w1_ref: (Ni_pad, N_pad)   bf16  VMEM (grid-invariant, single-buffered)
    # b1_ref: (1, N_pad)        f32   VMEM
    # w2_ref: (N_pad, Ni_pad)   bf16  VMEM (grid-invariant, single-buffered)
    # b2_ref: (1, Ni_pad)       f32   VMEM
    # o_ref : (tm, Ni_pad)      bf16  VMEM (lane-dense, padded to 128)
    x = x_ref[...].astype(jnp.bfloat16)
    h = jnp.dot(x, w1_ref[...], preferred_element_type=jnp.float32)
    # Dropout == identity (eval); bias-add + ReLU in f32 on the accumulator.
    h = jnp.maximum(h + b1_ref[...], 0.0)
    out = jnp.dot(h.astype(jnp.bfloat16), w2_ref[...], preferred_element_type=jnp.float32)
    o_ref[...] = (out + b2_ref[...]).astype(o_ref.dtype)


def prepare_params(w1, b1, w2, b2, *, lane=128):
    """One-time parameter prep (call OFF the hot path).

    Takes PyTorch nn.Linear layout (out_features, in_features) and returns ONLY
    arrays (safe to pass through jit):
      * weights transposed for x @ W on the MXU,
      * lane/contraction dims zero-padded to multiples of `lane`
        (128 for v5e, 256 recommended for v6e/v7x),
      * weights in bfloat16 (f32 accumulation inside the kernel), biases f32.
    """
    n, num_items = w1.shape
    ni_pad = _round_up(num_items, lane)
    n_pad = _round_up(n, lane)

    w1t = jnp.zeros((ni_pad, n_pad), jnp.bfloat16).at[:num_items, :n].set(
        w1.T.astype(jnp.bfloat16))
    w2t = jnp.zeros((n_pad, ni_pad), jnp.bfloat16).at[:n, :num_items].set(
        w2.T.astype(jnp.bfloat16))
    b1r = jnp.zeros((1, n_pad), jnp.float32).at[:, :n].set(b1.astype(jnp.float32))
    b2r = jnp.zeros((1, ni_pad), jnp.float32).at[:, :num_items].set(b2.astype(jnp.float32))
    params = {"w1t": w1t, "b1": b1r, "w2t": w2t, "b2": b2r}
    meta = {"num_items": int(num_items), "n": int(n)}          # static Python ints
    return params, meta


def classifier_forward(x, params, *, num_items, tm=128, out_dtype=jnp.bfloat16):
    """Eval-mode forward.  x: [B, num_items] f32.

    Returns the PADDED output buffer [Bp, ni_pad] (out_dtype).  Valid region is
    [:B, :num_items]; slice in the consumer (keeps the un-pad lazy / fusable).

    `num_items` must be a static Python int (bind with functools.partial before jit).
    tm: row tile.  128 fills the v5e MXU; use 256 on v6e/v7x (2x256x256 MXU) when
    the batch gives each TensorCore >=4 grid steps.
    """
    w1t, b1r = params["w1t"], params["b1"]
    w2t, b2r = params["w2t"], params["b2"]

    B, nf = x.shape
    assert nf == num_items, "feature dim must match num_items"
    ni_pad, n_pad = w1t.shape

    # Row-tile selection.  Tiny batches (<= 2 tiles) collapse to a single grid
    # step: per-step fixed overhead dwarfs the MXU work at this size.
    B8 = _round_up(max(B, 8), 8)
    tm_eff = B8 if B8 <= 2 * tm else tm
    Bp = _round_up(B, tm_eff)

    # x stays f32 (kernel casts to bf16).  Pad only when shapes require it.
    xp = x
    if (Bp != B) or (ni_pad != nf):
        xp = jnp.pad(xp, ((0, Bp - B), (0, ni_pad - nf)))

    grid = (Bp // tm_eff,)
    out_itemsize = jnp.dtype(out_dtype).itemsize

    # Grid-invariant operands: constant index_map => single-buffer (halves the
    # resident weight footprint in VMEM; key on v7x's 64 MiB VMEM).
    invariant = pl.Buffered(1)

    # VMEM budget: weights (x1) + biases (x1) + double-buffered x/out tiles + slack.
    weight_bytes = (w1t.size + w2t.size) * 2 + (b1r.size + b2r.size) * 4
    tile_bytes = tm_eff * ni_pad * 4 + tm_eff * ni_pad * out_itemsize
    vmem_limit = min(max(int(1.5 * (weight_bytes + 2 * tile_bytes)) + (2 << 20),
                         32 << 20), 128 << 20)

    flops = 2 * Bp * ni_pad * n_pad * 2  # two matmuls
    bytes_accessed = (xp.size * 4                       # x streamed once, f32
                      + (w1t.size + w2t.size) * 2       # bf16 weights, once
                      + (b1r.size + b2r.size) * 4
                      + Bp * ni_pad * out_itemsize)     # output write

    out = pl.pallas_call(
        mlp_kernel,
        out_shape=jax.ShapeDtypeStruct((Bp, ni_pad), out_dtype),
        grid_spec=pltpu.PrefetchScalarGridSpec(
            num_scalar_prefetch=0,
            grid=grid,
            in_specs=[
                pl.BlockSpec((tm_eff, ni_pad), lambda i: (i, 0)),          # x row tile
                pl.BlockSpec((ni_pad, n_pad), lambda i: (0, 0),
                             pipeline_mode=invariant),                     # W1^T
                pl.BlockSpec((1, n_pad), lambda i: (0, 0),
                             pipeline_mode=invariant),                     # b1
                pl.BlockSpec((n_pad, ni_pad), lambda i: (0, 0),
                             pipeline_mode=invariant),                     # W2^T
                pl.BlockSpec((1, ni_pad), lambda i: (0, 0),
                             pipeline_mode=invariant),                     # b2
            ],
            out_specs=pl.BlockSpec((tm_eff, ni_pad), lambda i: (i, 0)),
        ),
        compiler_params=pltpu.CompilerParams(
            dimension_semantics=("parallel",),
            vmem_limit_bytes=vmem_limit,
        ),
        cost_estimate=pl.CostEstimate(
            flops=flops, transcendentals=0, bytes_accessed=bytes_accessed),
    )(xp, w1t, b1r, w2t, b2r)

    return out


def init_params(key, num_items, n):
    """Deterministic init mimicking PyTorch nn.Linear default (uniform +/- 1/sqrt(fan_in))."""
    k1, k2, k3, k4 = jax.random.split(key, 4)
    bound1 = 1.0 / jnp.sqrt(jnp.float32(num_items))
    bound2 = 1.0 / jnp.sqrt(jnp.float32(n))
    w1 = jax.random.uniform(k1, (n, num_items), jnp.float32, -bound1, bound1)
    b1 = jax.random.uniform(k2, (n,), jnp.float32, -bound1, bound1)
    w2 = jax.random.uniform(k3, (num_items, n), jnp.float32, -bound2, bound2)
    b2 = jax.random.uniform(k4, (num_items,), jnp.float32, -bound2, bound2)
    return w1, b1, w2, b2


if __name__ == "__main__":
    # Small, deliberately non-aligned shapes to exercise the padding paths:
    # batch=250 (not a tile multiple), num_items=200 (not a multiple of 128),
    # hidden n=256 (config='movielens-100k').
    B, num_items, n = 250, 200, 256

    key = jax.random.PRNGKey(0)
    kx, kp = jax.random.split(key)
    x = jax.random.normal(kx, (B, num_items), jnp.float32)
    w1, b1, w2, b2 = init_params(kp, num_items, n)

    # One-time parameter preparation (transpose + pad + bf16 cast) -- off the hot path.
    params, meta = prepare_params(w1, b1, w2, b2, lane=128)

    # num_items is bound statically (NOT a traced pytree leaf).
    fwd = jax.jit(functools.partial(
        classifier_forward, num_items=meta["num_items"], tm=128,
        out_dtype=jnp.bfloat16))

    out_padded = jax.block_until_ready(fwd(x, params))

    # Un-pad lazily in the consumer (outside the jitted kernel call).
    out = out_padded[:B, :num_items].astype(jnp.float32)

    # Reference check (plain JAX, f32) for the same eval-mode semantics.
    # Tolerance covers bf16 weights / bf16 intermediate / bf16 output rounding.
    h_ref = jnp.maximum(x @ w1.T + b1, 0.0)
    ref = h_ref @ w2.T + b2
    assert out.shape == (B, num_items)
    max_err = float(jnp.max(jnp.abs(out - ref)))
    assert jnp.allclose(out, ref, atol=5e-2, rtol=5e-2), \
        f"mismatch vs reference (max abs err {max_err})"

    print("KERNEL_OK")
</pallas_src>

<mosaic_0001>
module attributes {stable_mosaic.version = 11 : i64} {
  func.func @mlp_kernel(%arg0: i32, %arg1: memref<256x256xf32, #tpu.memory_space<vmem>>, %arg2: memref<256x256xbf16, #tpu.memory_space<vmem>>, %arg3: memref<1x256xf32, #tpu.memory_space<vmem>>, %arg4: memref<256x256xbf16, #tpu.memory_space<vmem>>, %arg5: memref<1x256xf32, #tpu.memory_space<vmem>>, %arg6: memref<256x256xbf16, #tpu.memory_space<vmem>>) attributes {dimension_semantics = [#tpu.dimension_semantics<parallel>], iteration_bounds = array<i64: 1>, scalar_prefetch = 0 : i64, scratch_operands = 0 : i64, tpu.core_type = #tpu.core_type<tc>, window_params = [{transform_indices = @transform_0, window_bounds = array<i64: 256, 256>}, {pipeline_mode = #tpu.pipeline_mode<synchronous>, transform_indices = @transform_1, window_bounds = array<i64: 256, 256>}, {pipeline_mode = #tpu.pipeline_mode<synchronous>, transform_indices = @transform_2, window_bounds = array<i64: 1, 256>}, {pipeline_mode = #tpu.pipeline_mode<synchronous>, transform_indices = @transform_3, window_bounds = array<i64: 256, 256>}, {pipeline_mode = #tpu.pipeline_mode<synchronous>, transform_indices = @transform_4, window_bounds = array<i64: 1, 256>}, {transform_indices = @transform_5, window_bounds = array<i64: 256, 256>}]} {
    %c0 = arith.constant 0 : index
    %c0_0 = arith.constant 0 : index
    %0 = vector.load %arg1[%c0, %c0_0] : memref<256x256xf32, #tpu.memory_space<vmem>>, vector<256x256xf32>
    %1 = arith.truncf %0 : vector<256x256xf32> to vector<256x256xbf16>
    %c0_1 = arith.constant 0 : index
    %c0_2 = arith.constant 0 : index
    %2 = vector.load %arg2[%c0_1, %c0_2] : memref<256x256xbf16, #tpu.memory_space<vmem>>, vector<256x256xbf16>
    %cst = arith.constant dense<0.000000e+00> : vector<256x256xf32>
    %3 = tpu.matmul %1, %2, %cst {dimension_numbers = #tpu.dot_dimension_numbers<[1], [0], [0], [1], [0, 0, 1, 1], [], []>} : vector<256x256xbf16>, vector<256x256xbf16>, vector<256x256xf32> -> vector<256x256xf32>
    %c0_3 = arith.constant 0 : index
    %c0_4 = arith.constant 0 : index
    %4 = vector.load %arg3[%c0_3, %c0_4] : memref<1x256xf32, #tpu.memory_space<vmem>>, vector<1x256xf32>
    %5 = vector.broadcast %4 : vector<1x256xf32> to vector<256x256xf32>
    %6 = arith.addf %3, %5 : vector<256x256xf32>
    %cst_5 = arith.constant 0.000000e+00 : f32
    %7 = vector.broadcast %cst_5 : f32 to vector<256x256xf32>
    %8 = arith.maximumf %6, %7 : vector<256x256xf32>
    %9 = arith.truncf %8 : vector<256x256xf32> to vector<256x256xbf16>
    %c0_6 = arith.constant 0 : index
    %c0_7 = arith.constant 0 : index
    %10 = vector.load %arg4[%c0_6, %c0_7] : memref<256x256xbf16, #tpu.memory_space<vmem>>, vector<256x256xbf16>
    %cst_8 = arith.constant dense<0.000000e+00> : vector<256x256xf32>
    %11 = tpu.matmul %9, %10, %cst_8 {dimension_numbers = #tpu.dot_dimension_numbers<[1], [0], [0], [1], [0, 0, 1, 1], [], []>} : vector<256x256xbf16>, vector<256x256xbf16>, vector<256x256xf32> -> vector<256x256xf32>
    %c0_9 = arith.constant 0 : index
    %c0_10 = arith.constant 0 : index
    %12 = vector.load %arg5[%c0_9, %c0_10] : memref<1x256xf32, #tpu.memory_space<vmem>>, vector<1x256xf32>
    %13 = vector.broadcast %12 : vector<1x256xf32> to vector<256x256xf32>
    %14 = arith.addf %11, %13 : vector<256x256xf32>
    %15 = arith.truncf %14 : vector<256x256xf32> to vector<256x256xbf16>
    %c0_11 = arith.constant 0 : index
    %c0_12 = arith.constant 0 : index
    %16 = vector.load %arg6[%c0_11, %c0_12] : memref<256x256xbf16, #tpu.memory_space<vmem>>, vector<256x256xbf16>
    tpu.vector_store %arg6[%c0_11, %c0_12], %15 {strides = array<i32>} : memref<256x256xbf16, #tpu.memory_space<vmem>>, vector<256x256xbf16>,
    return
  }
  func.func @transform_0(%arg0: i32) -> (i32, i32) {
    %c0_i32 = arith.constant 0 : i32
    %c0_i32_0 = arith.constant 0 : i32
    return %arg0, %c0_i32 : i32, i32
  }
  func.func @transform_1(%arg0: i32) -> (i32, i32) {
    %c0_i32 = arith.constant 0 : i32
    %c0_i32_0 = arith.constant 0 : i32
    %c0_i32_1 = arith.constant 0 : i32
    return %c0_i32, %c0_i32_0 : i32, i32
  }
  func.func @transform_2(%arg0: i32) -> (i32, i32) {
    %c0_i32 = arith.constant 0 : i32
    %c0_i32_0 = arith.constant 0 : i32
    %c0_i32_1 = arith.constant 0 : i32
    return %c0_i32, %c0_i32_0 : i32, i32
  }
  func.func @transform_3(%arg0: i32) -> (i32, i32) {
    %c0_i32 = arith.constant 0 : i32
    %c0_i32_0 = arith.constant 0 : i32
    %c0_i32_1 = arith.constant 0 : i32
    return %c0_i32, %c0_i32_0 : i32, i32
  }
  func.func @transform_4(%arg0: i32) -> (i32, i32) {
    %c0_i32 = arith.constant 0 : i32
    %c0_i32_0 = arith.constant 0 : i32
    %c0_i32_1 = arith.constant 0 : i32
    return %c0_i32, %c0_i32_0 : i32, i32
  }
  func.func @transform_5(%arg0: i32) -> (i32, i32) {
    %c0_i32 = arith.constant 0 : i32
    %c0_i32_0 = arith.constant 0 : i32
    return %arg0, %c0_i32 : i32, i32
  }
}

</mosaic_0001>

<llo_original>
// kernel: classifier_forward.1
$region0: #{classifier_forward.1}
  #allocation0 [shape = 'u32[]', space=smem, size = 0x4, offset = 0x4, fixed_abs, tag = 'smem constant byte address 0x4 - core index']
  #allocation1 [shape = 'u32[144,128]{1,0:T(1,128)}', space=vmem, size = 0x12000, scoped, tag = 'internal scratch']
  %s0 = inlined_call_operand.vmem [shape: f32[256,256], index: 0, kind: input, shape index: {}]
  %s1 = inlined_call_operand.vmem [shape: bf16[256,256], index: 1, kind: input, shape index: {}]
  %s2 = inlined_call_operand.vmem [shape: f32[1,256], index: 2, kind: input, shape index: {}]
  %s3 = inlined_call_operand.vmem [shape: bf16[256,256], index: 3, kind: input, shape index: {}]
  %s4 = inlined_call_operand.vmem [shape: f32[1,256], index: 4, kind: input, shape index: {}]
  %s5 = inlined_call_operand.hbm [shape: bf16[256,256], index: 5, kind: output, shape index: {}]
  %s6 = sld [smem:[#allocation0]]
  $region30: #{classifier_forward.1} parent=0
    _
  %s8 = ssub.s32 1, %s6
  %s9 = scalar_select 0, %s8, %s6
  $region1: #{classifier_forward.1} parent=0
    #allocation2 [shape = 'u8[131072]{0}', space=vmem, size = 0x20000, scoped, tag = 'output window, operand 0, single buffered']
    #allocation3 [shape = 's32[1]{0}', space=sflag, size = 0x4, scoped, tag = 'scoped memory for classifier_forward.1']
    %10 = vsyncpa [#allocation3], 0
    // Predicated region
    $region2: #{classifier_forward.1} parent=1 // pred_check
      _
    $region3: #{classifier_forward.1} parent=1 // pred_check_branch
      %12 = sbr.rel (0) target = $region5
    $region4: #{classifier_forward.1} parent=1 // pred_region
      _
    $region5: #{classifier_forward.1} parent=1 // pred_fallthru
      _
    // Predicated region
    $region6: #{classifier_forward.1} parent=1 // pred_check
      _
    $region7: #{classifier_forward.1} parent=1 // pred_check_branch
      %14 = sbr.rel (0) target = $region9
    $region8: #{classifier_forward.1} parent=1 // pred_region
      _
    $region9: #{classifier_forward.1} parent=1 // pred_fallthru
      _
    // Predicated region
    $region10: #{classifier_forward.1} parent=1 // pred_check
      _
    $region11: #{classifier_forward.1} parent=1 // pred_check_branch
      %16 = sbr.rel (0) target = $region13
    $region12: #{classifier_forward.1} parent=1 // pred_region
      _
    $region13: #{classifier_forward.1} parent=1 // pred_fallthru
      _
    // Predicated region
    $region14: #{classifier_forward.1} parent=1 // pred_check
      _
    $region15: #{classifier_forward.1} parent=1 // pred_check_branch
      %18 = sbr.rel (0) target = $region17
    $region16: #{classifier_forward.1} parent=1 // pred_region
      _
    $region17: #{classifier_forward.1} parent=1 // pred_fallthru
      _
    // Predicated region
    $region18: #{classifier_forward.1} parent=1 // pred_check
      _
    $region19: #{classifier_forward.1} parent=1 // pred_check_branch
      %20 = sbr.rel (0) target = $region21
    $region20: #{classifier_forward.1} parent=1 // pred_region
      _
    $region21: #{classifier_forward.1} parent=1 // pred_fallthru
      _
    %v21 = vld [vmem:[%s0] sm:$0xff]
    %v22 = vld [vmem:[%s0 + $0x8] sm:$0xff]
    %v23 = vld [vmem:[%s0 + $0x10] sm:$0xff]
    %v24 = vld [vmem:[%s0 + $0x18] sm:$0xff]
    %v25 = vld [vmem:[%s0 + $0x20] sm:$0xff]
    %v26 = vld [vmem:[%s0 + $0x28] sm:$0xff]
    %v27 = vld [vmem:[%s0 + $0x30] sm:$0xff]
    %v28 = vld [vmem:[%s0 + $0x38] sm:$0xff]
    %v29 = vld [vmem:[%s0 + $0x40] sm:$0xff]
    %v30 = vld [vmem:[%s0 + $0x48] sm:$0xff]
    %v31 = vld [vmem:[%s0 + $0x50] sm:$0xff]
    %v32 = vld [vmem:[%s0 + $0x58] sm:$0xff]
    %v33 = vld [vmem:[%s0 + $0x60] sm:$0xff]
    %v34 = vld [vmem:[%s0 + $0x68] sm:$0xff]
    %v35 = vld [vmem:[%s0 + $0x70] sm:$0xff]
    %v36 = vld [vmem:[%s0 + $0x78] sm:$0xff]
    %v37 = vld [vmem:[%s0 + $0x80] sm:$0xff]
    %v38 = vld [vmem:[%s0 + $0x88] sm:$0xff]
    %v39 = vld [vmem:[%s0 + $0x90] sm:$0xff]
    %v40 = vld [vmem:[%s0 + $0x98] sm:$0xff]
    %v41 = vld [vmem:[%s0 + $0xa0] sm:$0xff]
    %v42 = vld [vmem:[%s0 + $0xa8] sm:$0xff]
    %v43 = vld [vmem:[%s0 + $0xb0] sm:$0xff]
    %v44 = vld [vmem:[%s0 + $0xb8] sm:$0xff]
    %v45 = vld [vmem:[%s0 + $0xc0] sm:$0xff]
    %v46 = vld [vmem:[%s0 + $0xc8] sm:$0xff]
    %v47 = vld [vmem:[%s0 + $0xd0] sm:$0xff]
    %v48 = vld [vmem:[%s0 + $0xd8] sm:$0xff]
    %v49 = vld [vmem:[%s0 + $0xe0] sm:$0xff]
    %v50 = vld [vmem:[%s0 + $0xe8] sm:$0xff]
    %v51 = vld [vmem:[%s0 + $0xf0] sm:$0xff]
    %v52 = vld [vmem:[%s0 + $0xf8] sm:$0xff]
    %v53 = vld [vmem:[%s0 + $0x100] sm:$0xff]
    %v54 = vld [vmem:[%s0 + $0x108] sm:$0xff]
    %v55 = vld [vmem:[%s0 + $0x110] sm:$0xff]
    %v56 = vld [vmem:[%s0 + $0x118] sm:$0xff]
    %v57 = vld [vmem:[%s0 + $0x120] sm:$0xff]
    %v58 = vld [vmem:[%s0 + $0x128] sm:$0xff]
    %v59 = vld [vmem:[%s0 + $0x130] sm:$0xff]
    %v60 = vld [vmem:[%s0 + $0x138] sm:$0xff]
    %v61 = vld [vmem:[%s0 + $0x140] sm:$0xff]
    %v62 = vld [vmem:[%s0 + $0x148] sm:$0xff]
    %v63 = vld [vmem:[%s0 + $0x150] sm:$0xff]
    %v64 = vld [vmem:[%s0 + $0x158] sm:$0xff]
    %v65 = vld [vmem:[%s0 + $0x160] sm:$0xff]
    %v66 = vld [vmem:[%s0 + $0x168] sm:$0xff]
    %v67 = vld [vmem:[%s0 + $0x170] sm:$0xff]
    %v68 = vld [vmem:[%s0 + $0x178] sm:$0xff]
    %v69 = vld [vmem:[%s0 + $0x180] sm:$0xff]
    %v70 = vld [vmem:[%s0 + $0x188] sm:$0xff]
    %v71 = vld [vmem:[%s0 + $0x190] sm:$0xff]
    %v72 = vld [vmem:[%s0 + $0x198] sm:$0xff]
    %v73 = vld [vmem:[%s0 + $0x1a0] sm:$0xff]
    %v74 = vld [vmem:[%s0 + $0x1a8] sm:$0xff]
    %v75 = vld [vmem:[%s0 + $0x1b0] sm:$0xff]
    %v76 = vld [vmem:[%s0 + $0x1b8] sm:$0xff]
    %v77 = vld [vmem:[%s0 + $0x1c0] sm:$0xff]
    %v78 = vld [vmem:[%s0 + $0x1c8] sm:$0xff]
    %v79 = vld [vmem:[%s0 + $0x1d0] sm:$0xff]
    %v80 = vld [vmem:[%s0 + $0x1d8] sm:$0xff]
    %v81 = vld [vmem:[%s0 + $0x1e0] sm:$0xff]
    %v82 = vld [vmem:[%s0 + $0x1e8] sm:$0xff]
    %v83 = vld [vmem:[%s0 + $0x1f0] sm:$0xff]
    %v84 = vld [vmem:[%s0 + $0x1f8] sm:$0xff]
    %v85 = vpack.c.bf16 %v23, %v21
    %v86 = vpack.c.bf16 %v24, %v22
    %v87 = vpack.c.bf16 %v27, %v25
    %v88 = vpack.c.bf16 %v28, %v26
    %v89 = vpack.c.bf16 %v31, %v29
    %v90 = vpack.c.bf16 %v32, %v30
    %v91 = vpack.c.bf16 %v35, %v33
    %v92 = vpack.c.bf16 %v36, %v34
    %v93 = vpack.c.bf16 %v39, %v37
    %v94 = vpack.c.bf16 %v40, %v38
    %v95 = vpack.c.bf16 %v43, %v41
    %v96 = vpack.c.bf16 %v44, %v42
    %v97 = vpack.c.bf16 %v47, %v45
    %v98 = vpack.c.bf16 %v48, %v46
    %v99 = vpack.c.bf16 %v51, %v49
    %v100 = vpack.c.bf16 %v52, %v50
    %v101 = vpack.c.bf16 %v55, %v53
    %v102 = vpack.c.bf16 %v56, %v54
    %v103 = vpack.c.bf16 %v59, %v57
    %v104 = vpack.c.bf16 %v60, %v58
    %v105 = vpack.c.bf16 %v63, %v61
    %v106 = vpack.c.bf16 %v64, %v62
    %v107 = vpack.c.bf16 %v67, %v65
    %v108 = vpack.c.bf16 %v68, %v66
    %v109 = vpack.c.bf16 %v71, %v69
    %v110 = vpack.c.bf16 %v72, %v70
    %v111 = vpack.c.bf16 %v75, %v73
    %v112 = vpack.c.bf16 %v76, %v74
    %v113 = vpack.c.bf16 %v79, %v77
    %v114 = vpack.c.bf16 %v80, %v78
    %v115 = vpack.c.bf16 %v83, %v81
    %v116 = vpack.c.bf16 %v84, %v82
    %v117 = vld [vmem:[%s1] sm:$0xff]
    %v118 = vld [vmem:[%s1 + $0x8] sm:$0xff]
    %v119 = vld [vmem:[%s1 + $0x10] sm:$0xff]
    %v120 = vld [vmem:[%s1 + $0x18] sm:$0xff]
    %v121 = vld [vmem:[%s1 + $0x20] sm:$0xff]
    %v122 = vld [vmem:[%s1 + $0x28] sm:$0xff]
    %v123 = vld [vmem:[%s1 + $0x30] sm:$0xff]
    %v124 = vld [vmem:[%s1 + $0x38] sm:$0xff]
    %v125 = vld [vmem:[%s1 + $0x40] sm:$0xff]
    %v126 = vld [vmem:[%s1 + $0x48] sm:$0xff]
    %v127 = vld [vmem:[%s1 + $0x50] sm:$0xff]
    %v128 = vld [vmem:[%s1 + $0x58] sm:$0xff]
    %v129 = vld [vmem:[%s1 + $0x60] sm:$0xff]
    %v130 = vld [vmem:[%s1 + $0x68] sm:$0xff]
    %v131 = vld [vmem:[%s1 + $0x70] sm:$0xff]
    %v132 = vld [vmem:[%s1 + $0x78] sm:$0xff]
    %v133 = vld [vmem:[%s1 + $0x80] sm:$0xff]
    %v134 = vld [vmem:[%s1 + $0x88] sm:$0xff]
    %v135 = vld [vmem:[%s1 + $0x90] sm:$0xff]
    %v136 = vld [vmem:[%s1 + $0x98] sm:$0xff]
    %v137 = vld [vmem:[%s1 + $0xa0] sm:$0xff]
    %v138 = vld [vmem:[%s1 + $0xa8] sm:$0xff]
    %v139 = vld [vmem:[%s1 + $0xb0] sm:$0xff]
    %v140 = vld [vmem:[%s1 + $0xb8] sm:$0xff]
    %v141 = vld [vmem:[%s1 + $0xc0] sm:$0xff]
    %v142 = vld [vmem:[%s1 + $0xc8] sm:$0xff]
    %v143 = vld [vmem:[%s1 + $0xd0] sm:$0xff]
    %v144 = vld [vmem:[%s1 + $0xd8] sm:$0xff]
    %v145 = vld [vmem:[%s1 + $0xe0] sm:$0xff]
    %v146 = vld [vmem:[%s1 + $0xe8] sm:$0xff]
    %v147 = vld [vmem:[%s1 + $0xf0] sm:$0xff]
    %v148 = vld [vmem:[%s1 + $0xf8] sm:$0xff]
    %v149 = vld [vmem:[%s2] sm:$0x3]
    %v151 = vlaneseq
    %v152 = vshrl.u32 %v151, 7
    %v153 = vsub.s32 0, %v152
    %v154 = vrot.slane %v149, %v153
    %v155 = vlaneseq
    %v156 = vshrl.u32 %v155, 7
    %v157 = vsub.s32 1, %v156
    %v158 = vrot.slane %v149, %v157
    %v193 = vunpack.c.l.b16 %v117
    %v194 = vunpack.c.h.b16 %v117
    %v195 = vunpack.c.l.b16 %v118
    %v196 = vunpack.c.h.b16 %v118
    %v197 = vunpack.c.l.b16 %v119
    %v198 = vunpack.c.h.b16 %v119
    %v199 = vunpack.c.l.b16 %v120
    %v200 = vunpack.c.h.b16 %v120
    %v201 = vunpack.c.l.b16 %v121
    %v202 = vunpack.c.h.b16 %v121
    %v203 = vunpack.c.l.b16 %v122
    %v204 = vunpack.c.h.b16 %v122
    %v205 = vunpack.c.l.b16 %v123
    %v206 = vunpack.c.h.b16 %v123
    %v207 = vunpack.c.l.b16 %v124
    %v208 = vunpack.c.h.b16 %v124
    %v209 = vunpack.c.l.b16 %v125
    %v210 = vunpack.c.h.b16 %v125
    %v211 = vunpack.c.l.b16 %v126
    %v212 = vunpack.c.h.b16 %v126
    %v213 = vunpack.c.l.b16 %v127
    %v214 = vunpack.c.h.b16 %v127
    %v215 = vunpack.c.l.b16 %v128
    %v216 = vunpack.c.h.b16 %v128
    %v217 = vunpack.c.l.b16 %v129
    %v218 = vunpack.c.h.b16 %v129
    %v219 = vunpack.c.l.b16 %v130
    %v220 = vunpack.c.h.b16 %v130
    %v221 = vunpack.c.l.b16 %v131
    %v222 = vunpack.c.h.b16 %v131
    %v223 = vunpack.c.l.b16 %v132
    %v224 = vunpack.c.h.b16 %v132
    %v225 = vunpack.c.l.b16 %v133
    %v226 = vunpack.c.h.b16 %v133
    %v227 = vunpack.c.l.b16 %v134
    %v228 = vunpack.c.h.b16 %v134
    %v229 = vunpack.c.l.b16 %v135
    %v230 = vunpack.c.h.b16 %v135
    %v231 = vunpack.c.l.b16 %v136
    %v232 = vunpack.c.h.b16 %v136
    %v233 = vunpack.c.l.b16 %v137
    %v234 = vunpack.c.h.b16 %v137
    %v235 = vunpack.c.l.b16 %v138
    %v236 = vunpack.c.h.b16 %v138
    %v237 = vunpack.c.l.b16 %v139
    %v238 = vunpack.c.h.b16 %v139
    %v239 = vunpack.c.l.b16 %v140
    %v240 = vunpack.c.h.b16 %v140
    %v241 = vunpack.c.l.b16 %v141
    %v242 = vunpack.c.h.b16 %v141
    %v243 = vunpack.c.l.b16 %v142
    %v244 = vunpack.c.h.b16 %v142
    %v245 = vunpack.c.l.b16 %v143
    %v246 = vunpack.c.h.b16 %v143
    %v247 = vunpack.c.l.b16 %v144
    %v248 = vunpack.c.h.b16 %v144
    %v249 = vunpack.c.l.b16 %v145
    %v250 = vunpack.c.h.b16 %v145
    %v251 = vunpack.c.l.b16 %v146
    %v252 = vunpack.c.h.b16 %v146
    %v253 = vunpack.c.l.b16 %v147
    %v254 = vunpack.c.h.b16 %v147
    %v255 = vunpack.c.l.b16 %v148
    %v256 = vunpack.c.h.b16 %v148
    %v257 = vpack.c.b16 %v195, %v193
    %v258 = vpack.c.b16 %v196, %v194
    %v259 = vpack.c.b16 %v199, %v197
    %v260 = vpack.c.b16 %v200, %v198
    %v261 = vpack.c.b16 %v203, %v201
    %v262 = vpack.c.b16 %v204, %v202
    %v263 = vpack.c.b16 %v207, %v205
    %v264 = vpack.c.b16 %v208, %v206
    %v265 = vpack.c.b16 %v211, %v209
    %v266 = vpack.c.b16 %v212, %v210
    %v267 = vpack.c.b16 %v215, %v213
    %v268 = vpack.c.b16 %v216, %v214
    %v269 = vpack.c.b16 %v219, %v217
    %v270 = vpack.c.b16 %v220, %v218
    %v271 = vpack.c.b16 %v223, %v221
    %v272 = vpack.c.b16 %v224, %v222
    %v273 = vpack.c.b16 %v227, %v225
    %v274 = vpack.c.b16 %v228, %v226
    %v275 = vpack.c.b16 %v231, %v229
    %v276 = vpack.c.b16 %v232, %v230
    %v277 = vpack.c.b16 %v235, %v233
    %v278 = vpack.c.b16 %v236, %v234
    %v279 = vpack.c.b16 %v239, %v237
    %v280 = vpack.c.b16 %v240, %v238
    %v281 = vpack.c.b16 %v243, %v241
    %v282 = vpack.c.b16 %v244, %v242
    %v283 = vpack.c.b16 %v247, %v245
    %v284 = vpack.c.b16 %v248, %v246
    %v285 = vpack.c.b16 %v251, %v249
    %v286 = vpack.c.b16 %v252, %v250
    %v287 = vpack.c.b16 %v255, %v253
    %v288 = vpack.c.b16 %v256, %v254
    %321 = vmatprep.subr.bf16.mxu0 %v258
    %322 = vmatpush1.bf16.msra.mxu0 %v257
    %323 = vmatprep.subr.bf16.mxu0 %v260
    %324 = vmatpush1.bf16.msra.mxu0 %v259
    %325 = vmatprep.subr.bf16.mxu0 %v262
    %326 = vmatpush1.bf16.msra.mxu0 %v261
    %327 = vmatprep.subr.bf16.mxu0 %v264
    %328 = vmatpush1.bf16.msra.mxu0 %v263
    %329 = vmatprep.subr.bf16.mxu0 %v266
    %330 = vmatpush1.bf16.msra.mxu0 %v265
    %331 = vmatprep.subr.bf16.mxu0 %v268
    %332 = vmatpush1.bf16.msra.mxu0 %v267
    %333 = vmatprep.subr.bf16.mxu0 %v270
    %334 = vmatpush1.bf16.msra.mxu0 %v269
    %335 = vmatprep.subr.bf16.mxu0 %v272
    %336 = vmatpush1.bf16.msra.mxu0 %v271
    %337 = vmatprep.subr.bf16.mxu0 %v274
    %338 = vmatpush1.bf16.msra.mxu0 %v273
    %339 = vmatprep.subr.bf16.mxu0 %v276
    %340 = vmatpush1.bf16.msra.mxu0 %v275
    %341 = vmatprep.subr.bf16.mxu0 %v278
    %342 = vmatpush1.bf16.msra.mxu0 %v277
    %343 = vmatprep.subr.bf16.mxu0 %v280
    %344 = vmatpush1.bf16.msra.mxu0 %v279
    %345 = vmatprep.subr.bf16.mxu0 %v282
    %346 = vmatpush1.bf16.msra.mxu0 %v281
    %347 = vmatprep.subr.bf16.mxu0 %v284
    %348 = vmatpush1.bf16.msra.mxu0 %v283
    %349 = vmatprep.subr.bf16.mxu0 %v286
    %350 = vmatpush1.bf16.msra.mxu0 %v285
    %351 = vmatprep.subr.bf16.mxu0 %v288
    %352 = vmatpush1.bf16.msra.mxu0 %v287
    %353 = vmatprep.mubr.bf16.mxu0 %v86
    %354 = vmatmul.mubr.bf16.gmra.mrb[0].mxu0 %v85
    %v355 = vpop.f32.mrb[0].mxu0
    %v356 = vadd.f32 %v154, %v355
    %v357 = vpop.f32.mrb[0].mxu0
    %v358 = vadd.f32 %v158, %v357
    %v359 = vpop.f32.mrb[0].mxu0
    %v360 = vadd.f32 %v154, %v359
    %v361 = vpop.f32.mrb[0].mxu0
    %v362 = vadd.f32 %v158, %v361
    %363 = vmatprep.mubr.bf16.mxu0 %v88
    %364 = vmatmul.mubr.bf16.gmra.mrb[0].mxu0 %v87
    %v365 = vpop.f32.mrb[0].mxu0
    %v366 = vadd.f32 %v154, %v365
    %v367 = vpop.f32.mrb[0].mxu0
    %v368 = vadd.f32 %v158, %v367
    %v369 = vpop.f32.mrb[0].mxu0
    %v370 = vadd.f32 %v154, %v369
    %v371 = vpop.f32.mrb[0].mxu0
    %v372 = vadd.f32 %v158, %v371
    %373 = vmatprep.mubr.bf16.mxu0 %v90
    %374 = vmatmul.mubr.bf16.gmra.mrb[0].mxu0 %v89
    %v375 = vpop.f32.mrb[0].mxu0
    %v376 = vadd.f32 %v154, %v375
    %v377 = vpop.f32.mrb[0].mxu0
    %v378 = vadd.f32 %v158, %v377
    %v379 = vpop.f32.mrb[0].mxu0
    %v380 = vadd.f32 %v154, %v379
    %v381 = vpop.f32.mrb[0].mxu0
    %v382 = vadd.f32 %v158, %v381
    %383 = vmatprep.mubr.bf16.mxu0 %v92
    %384 = vmatmul.mubr.bf16.gmra.mrb[0].mxu0 %v91
    %v385 = vpop.f32.mrb[0].mxu0
    %v386 = vadd.f32 %v154, %v385
    %v387 = vpop.f32.mrb[0].mxu0
    %v388 = vadd.f32 %v158, %v387
    %v389 = vpop.f32.mrb[0].mxu0
    %v390 = vadd.f32 %v154, %v389
    %v391 = vpop.f32.mrb[0].mxu0
    %v392 = vadd.f32 %v158, %v391
    %393 = vmatprep.mubr.bf16.mxu0 %v94
    %394 = vmatmul.mubr.bf16.gmra.mrb[0].mxu0 %v93
    %v395 = vpop.f32.mrb[0].mxu0
    %v396 = vadd.f32 %v154, %v395
    %v397 = vpop.f32.mrb[0].mxu0
    %v398 = vadd.f32 %v158, %v397
    %v399 = vpop.f32.mrb[0].mxu0
    %v400 = vadd.f32 %v154, %v399
    %v401 = vpop.f32.mrb[0].mxu0
    %v402 = vadd.f32 %v158, %v401
    %403 = vmatprep.mubr.bf16.mxu0 %v96
    %404 = vmatmul.mubr.bf16.gmra.mrb[0].mxu0 %v95
    %v405 = vpop.f32.mrb[0].mxu0
    %v406 = vadd.f32 %v154, %v405
    %v407 = vpop.f32.mrb[0].mxu0
    %v408 = vadd.f32 %v158, %v407
    %v409 = vpop.f32.mrb[0].mxu0
    %v410 = vadd.f32 %v154, %v409
    %v411 = vpop.f32.mrb[0].mxu0
    %v412 = vadd.f32 %v158, %v411
    %413 = vmatprep.mubr.bf16.mxu0 %v98
    %414 = vmatmul.mubr.bf16.gmra.mrb[0].mxu0 %v97
    %v415 = vpop.f32.mrb[0].mxu0
    %v416 = vadd.f32 %v154, %v415
    %v417 = vpop.f32.mrb[0].mxu0
    %v418 = vadd.f32 %v158, %v417
    %v419 = vpop.f32.mrb[0].mxu0
    %v420 = vadd.f32 %v154, %v419
    %v421 = vpop.f32.mrb[0].mxu0
    %v422 = vadd.f32 %v158, %v421
    %423 = vmatprep.mubr.bf16.mxu0 %v100
    %424 = vmatmul.mubr.bf16.gmra.mrb[0].mxu0 %v99
    %v425 = vpop.f32.mrb[0].mxu0
    %v426 = vadd.f32 %v154, %v425
    %v427 = vpop.f32.mrb[0].mxu0
    %v428 = vadd.f32 %v158, %v427
    %v429 = vpop.f32.mrb[0].mxu0
    %v430 = vadd.f32 %v154, %v429
    %v431 = vpop.f32.mrb[0].mxu0
    %v432 = vadd.f32 %v158, %v431
    %433 = vmatprep.mubr.bf16.mxu0 %v102
    %434 = vmatmul.mubr.bf16.gmra.mrb[0].mxu0 %v101
    %v435 = vpop.f32.mrb[0].mxu0
    %v436 = vadd.f32 %v154, %v435
    %v437 = vpop.f32.mrb[0].mxu0
    %v438 = vadd.f32 %v158, %v437
    %v439 = vpop.f32.mrb[0].mxu0
    %v440 = vadd.f32 %v154, %v439
    %v441 = vpop.f32.mrb[0].mxu0
    %v442 = vadd.f32 %v158, %v441
    %443 = vmatprep.mubr.bf16.mxu0 %v104
    %444 = vmatmul.mubr.bf16.gmra.mrb[0].mxu0 %v103
    %v445 = vpop.f32.mrb[0].mxu0
    %v446 = vadd.f32 %v154, %v445
    %v447 = vpop.f32.mrb[0].mxu0
    %v448 = vadd.f32 %v158, %v447
    %v449 = vpop.f32.mrb[0].mxu0
    %v450 = vadd.f32 %v154, %v449
    %v451 = vpop.f32.mrb[0].mxu0
    %v452 = vadd.f32 %v158, %v451
    %453 = vmatprep.mubr.bf16.mxu0 %v106
    %454 = vmatmul.mubr.bf16.gmra.mrb[0].mxu0 %v105
    %v455 = vpop.f32.mrb[0].mxu0
    %v456 = vadd.f32 %v154, %v455
    %v457 = vpop.f32.mrb[0].mxu0
    %v458 = vadd.f32 %v158, %v457
    %v459 = vpop.f32.mrb[0].mxu0
    %v460 = vadd.f32 %v154, %v459
    %v461 = vpop.f32.mrb[0].mxu0
    %v462 = vadd.f32 %v158, %v461
    %463 = vmatprep.mubr.bf16.mxu0 %v108
    %464 = vmatmul.mubr.bf16.gmra.mrb[0].mxu0 %v107
    %v465 = vpop.f32.mrb[0].mxu0
    %v466 = vadd.f32 %v154, %v465
    %v467 = vpop.f32.mrb[0].mxu0
    %v468 = vadd.f32 %v158, %v467
    %v469 = vpop.f32.mrb[0].mxu0
    %v470 = vadd.f32 %v154, %v469
    %v471 = vpop.f32.mrb[0].mxu0
    %v472 = vadd.f32 %v158, %v471
    %473 = vmatprep.mubr.bf16.mxu0 %v110
    %474 = vmatmul.mubr.bf16.gmra.mrb[0].mxu0 %v109
    %v475 = vpop.f32.mrb[0].mxu0
    %v476 = vadd.f32 %v154, %v475
    %v477 = vpop.f32.mrb[0].mxu0
    %v478 = vadd.f32 %v158, %v477
    %v479 = vpop.f32.mrb[0].mxu0
    %v480 = vadd.f32 %v154, %v479
    %v481 = vpop.f32.mrb[0].mxu0
    %v482 = vadd.f32 %v158, %v481
    %483 = vmatprep.mubr.bf16.mxu0 %v112
    %484 = vmatmul.mubr.bf16.gmra.mrb[0].mxu0 %v111
    %v485 = vpop.f32.mrb[0].mxu0
    %v486 = vadd.f32 %v154, %v485
    %v487 = vpop.f32.mrb[0].mxu0
    %v488 = vadd.f32 %v158, %v487
    %v489 = vpop.f32.mrb[0].mxu0
    %v490 = vadd.f32 %v154, %v489
    %v491 = vpop.f32.mrb[0].mxu0
    %v492 = vadd.f32 %v158, %v491
    %493 = vmatprep.mubr.bf16.mxu0 %v114
    %494 = vmatmul.mubr.bf16.gmra.mrb[0].mxu0 %v113
    %v495 = vpop.f32.mrb[0].mxu0
    %v496 = vadd.f32 %v154, %v495
    %v497 = vpop.f32.mrb[0].mxu0
    %v498 = vadd.f32 %v158, %v497
    %v499 = vpop.f32.mrb[0].mxu0
    %v500 = vadd.f32 %v154, %v499
    %v501 = vpop.f32.mrb[0].mxu0
    %v502 = vadd.f32 %v158, %v501
    %503 = vmatprep.mubr.bf16.mxu0 %v116
    %504 = vmatmul.mubr.bf16.gmra.mrb[0].mxu0 %v115
    %v505 = vpop.f32.mrb[0].mxu0
    %v506 = vadd.f32 %v154, %v505
    %v507 = vpop.f32.mrb[0].mxu0
    %v508 = vadd.f32 %v158, %v507
    %v509 = vpop.f32.mrb[0].mxu0
    %v510 = vadd.f32 %v154, %v509
    %v511 = vpop.f32.mrb[0].mxu0
    %v512 = vadd.f32 %v158, %v511
    %513 = vdwg.mxu0
    %v514 = vmax.f32 %v356, 0.0
    %v515 = vmax.f32 %v358, 0.0
    %v516 = vmax.f32 %v360, 0.0
    %v517 = vmax.f32 %v362, 0.0
    %v518 = vmax.f32 %v366, 0.0
    %v519 = vmax.f32 %v368, 0.0
    %v520 = vmax.f32 %v370, 0.0
    %v521 = vmax.f32 %v372, 0.0
    %v522 = vmax.f32 %v376, 0.0
    %v523 = vmax.f32 %v378, 0.0
    %v524 = vmax.f32 %v380, 0.0
    %v525 = vmax.f32 %v382, 0.0
    %v526 = vmax.f32 %v386, 0.0
    %v527 = vmax.f32 %v388, 0.0
    %v528 = vmax.f32 %v390, 0.0
    %v529 = vmax.f32 %v392, 0.0
    %v530 = vmax.f32 %v396, 0.0
    %v531 = vmax.f32 %v398, 0.0
    %v532 = vmax.f32 %v400, 0.0
    %v533 = vmax.f32 %v402, 0.0
    %v534 = vmax.f32 %v406, 0.0
    %v535 = vmax.f32 %v408, 0.0
    %v536 = vmax.f32 %v410, 0.0
    %v537 = vmax.f32 %v412, 0.0
    %v538 = vmax.f32 %v416, 0.0
    %v539 = vmax.f32 %v418, 0.0
    %v540 = vmax.f32 %v420, 0.0
    %v541 = vmax.f32 %v422, 0.0
    %v542 = vmax.f32 %v426, 0.0
    %v543 = vmax.f32 %v428, 0.0
    %v544 = vmax.f32 %v430, 0.0
    %v545 = vmax.f32 %v432, 0.0
    %v546 = vmax.f32 %v436, 0.0
    %v547 = vmax.f32 %v438, 0.0
    %v548 = vmax.f32 %v440, 0.0
    %v549 = vmax.f32 %v442, 0.0
    %v550 = vmax.f32 %v446, 0.0
    %v551 = vmax.f32 %v448, 0.0
    %v552 = vmax.f32 %v450, 0.0
    %v553 = vmax.f32 %v452, 0.0
    %v554 = vmax.f32 %v456, 0.0
    %v555 = vmax.f32 %v458, 0.0
    %v556 = vmax.f32 %v460, 0.0
    %v557 = vmax.f32 %v462, 0.0
    %v558 = vmax.f32 %v466, 0.0
    %v559 = vmax.f32 %v468, 0.0
    %v560 = vmax.f32 %v470, 0.0
    %v561 = vmax.f32 %v472, 0.0
    %v562 = vmax.f32 %v476, 0.0
    %v563 = vmax.f32 %v478, 0.0
    %v564 = vmax.f32 %v480, 0.0
    %v565 = vmax.f32 %v482, 0.0
    %v566 = vmax.f32 %v486, 0.0
    %v567 = vmax.f32 %v488, 0.0
    %v568 = vmax.f32 %v490, 0.0
    %v569 = vmax.f32 %v492, 0.0
    %v570 = vmax.f32 %v496, 0.0
    %v571 = vmax.f32 %v498, 0.0
    %v572 = vmax.f32 %v500, 0.0
    %v573 = vmax.f32 %v502, 0.0
    %v574 = vmax.f32 %v506, 0.0
    %v575 = vmax.f32 %v508, 0.0
    %v576 = vmax.f32 %v510, 0.0
    %v577 = vmax.f32 %v512, 0.0
    %v578 = vpack.c.bf16 %v516, %v514
    %v579 = vpack.c.bf16 %v517, %v515
    %v580 = vpack.c.bf16 %v520, %v518
    %v581 = vpack.c.bf16 %v521, %v519
    %v582 = vpack.c.bf16 %v524, %v522
    %v583 = vpack.c.bf16 %v525, %v523
    %v584 = vpack.c.bf16 %v528, %v526
    %v585 = vpack.c.bf16 %v529, %v527
    %v586 = vpack.c.bf16 %v532, %v530
    %v587 = vpack.c.bf16 %v533, %v531
    %v588 = vpack.c.bf16 %v536, %v534
    %v589 = vpack.c.bf16 %v537, %v535
    %v590 = vpack.c.bf16 %v540, %v538
    %v591 = vpack.c.bf16 %v541, %v539
    %v592 = vpack.c.bf16 %v544, %v542
    %v593 = vpack.c.bf16 %v545, %v543
    %v594 = vpack.c.bf16 %v548, %v546
    %v595 = vpack.c.bf16 %v549, %v547
    %v596 = vpack.c.bf16 %v552, %v550
    %v597 = vpack.c.bf16 %v553, %v551
    %v598 = vpack.c.bf16 %v556, %v554
    %v599 = vpack.c.bf16 %v557, %v555
    %v600 = vpack.c.bf16 %v560, %v558
    %v601 = vpack.c.bf16 %v561, %v559
    %v602 = vpack.c.bf16 %v564, %v562
    %v603 = vpack.c.bf16 %v565, %v563
    %v604 = vpack.c.bf16 %v568, %v566
    %v605 = vpack.c.bf16 %v569, %v567
    %v606 = vpack.c.bf16 %v572, %v570
    %v607 = vpack.c.bf16 %v573, %v571
    %v608 = vpack.c.bf16 %v576, %v574
    %v609 = vpack.c.bf16 %v577, %v575
    %v610 = vld [vmem:[%s3] sm:$0xff]
    %v611 = vld [vmem:[%s3 + $0x8] sm:$0xff]
    %v612 = vld [vmem:[%s3 + $0x10] sm:$0xff]
    %v613 = vld [vmem:[%s3 + $0x18] sm:$0xff]
    %v614 = vld [vmem:[%s3 + $0x20] sm:$0xff]
    %v615 = vld [vmem:[%s3 + $0x28] sm:$0xff]
    %v616 = vld [vmem:[%s3 + $0x30] sm:$0xff]
    %v617 = vld [vmem:[%s3 + $0x38] sm:$0xff]
    %v618 = vld [vmem:[%s3 + $0x40] sm:$0xff]
    %v619 = vld [vmem:[%s3 + $0x48] sm:$0xff]
    %v620 = vld [vmem:[%s3 + $0x50] sm:$0xff]
    %v621 = vld [vmem:[%s3 + $0x58] sm:$0xff]
    %v622 = vld [vmem:[%s3 + $0x60] sm:$0xff]
    %v623 = vld [vmem:[%s3 + $0x68] sm:$0xff]
    %v624 = vld [vmem:[%s3 + $0x70] sm:$0xff]
    %v625 = vld [vmem:[%s3 + $0x78] sm:$0xff]
    %v626 = vld [vmem:[%s3 + $0x80] sm:$0xff]
    %v627 = vld [vmem:[%s3 + $0x88] sm:$0xff]
    %v628 = vld [vmem:[%s3 + $0x90] sm:$0xff]
    %v629 = vld [vmem:[%s3 + $0x98] sm:$0xff]
    %v630 = vld [vmem:[%s3 + $0xa0] sm:$0xff]
    %v631 = vld [vmem:[%s3 + $0xa8] sm:$0xff]
    %v632 = vld [vmem:[%s3 + $0xb0] sm:$0xff]
    %v633 = vld [vmem:[%s3 + $0xb8] sm:$0xff]
    %v634 = vld [vmem:[%s3 + $0xc0] sm:$0xff]
    %v635 = vld [vmem:[%s3 + $0xc8] sm:$0xff]
    %v636 = vld [vmem:[%s3 + $0xd0] sm:$0xff]
    %v637 = vld [vmem:[%s3 + $0xd8] sm:$0xff]
    %v638 = vld [vmem:[%s3 + $0xe0] sm:$0xff]
    %v639 = vld [vmem:[%s3 + $0xe8] sm:$0xff]
    %v640 = vld [vmem:[%s3 + $0xf0] sm:$0xff]
    %v641 = vld [vmem:[%s3 + $0xf8] sm:$0xff]
    %v642 = vld [vmem:[%s4] sm:$0x3]
    %v644 = vlaneseq
    %v645 = vshrl.u32 %v644, 7
    %v646 = vsub.s32 0, %v645
    %v647 = vrot.slane %v642, %v646
    %v648 = vlaneseq
    %v649 = vshrl.u32 %v648, 7
    %v650 = vsub.s32 1, %v649
    %v651 = vrot.slane %v642, %v650
    %v686 = vunpack.c.l.b16 %v610
    %v687 = vunpack.c.h.b16 %v610
    %v688 = vunpack.c.l.b16 %v611
    %v689 = vunpack.c.h.b16 %v611
    %v690 = vunpack.c.l.b16 %v612
    %v691 = vunpack.c.h.b16 %v612
    %v692 = vunpack.c.l.b16 %v613
    %v693 = vunpack.c.h.b16 %v613
    %v694 = vunpack.c.l.b16 %v614
    %v695 = vunpack.c.h.b16 %v614
    %v696 = vunpack.c.l.b16 %v615
    %v697 = vunpack.c.h.b16 %v615
    %v698 = vunpack.c.l.b16 %v616
    %v699 = vunpack.c.h.b16 %v616
    %v700 = vunpack.c.l.b16 %v617
    %v701 = vunpack.c.h.b16 %v617
    %v702 = vunpack.c.l.b16 %v618
    %v703 = vunpack.c.h.b16 %v618
    %v704 = vunpack.c.l.b16 %v619
    %v705 = vunpack.c.h.b16 %v619
    %v706 = vunpack.c.l.b16 %v620
    %v707 = vunpack.c.h.b16 %v620
    %v708 = vunpack.c.l.b16 %v621
    %v709 = vunpack.c.h.b16 %v621
    %v710 = vunpack.c.l.b16 %v622
    %v711 = vunpack.c.h.b16 %v622
    %v712 = vunpack.c.l.b16 %v623
    %v713 = vunpack.c.h.b16 %v623
    %v714 = vunpack.c.l.b16 %v624
    %v715 = vunpack.c.h.b16 %v624
    %v716 = vunpack.c.l.b16 %v625
    %v717 = vunpack.c.h.b16 %v625
    %v718 = vunpack.c.l.b16 %v626
    %v719 = vunpack.c.h.b16 %v626
    %v720 = vunpack.c.l.b16 %v627
    %v721 = vunpack.c.h.b16 %v627
    %v722 = vunpack.c.l.b16 %v628
    %v723 = vunpack.c.h.b16 %v628
    %v724 = vunpack.c.l.b16 %v629
    %v725 = vunpack.c.h.b16 %v629
    %v726 = vunpack.c.l.b16 %v630
    %v727 = vunpack.c.h.b16 %v630
    %v728 = vunpack.c.l.b16 %v631
    %v729 = vunpack.c.h.b16 %v631
    %v730 = vunpack.c.l.b16 %v632
    %v731 = vunpack.c.h.b16 %v632
    %v732 = vunpack.c.l.b16 %v633
    %v733 = vunpack.c.h.b16 %v633
    %v734 = vunpack.c.l.b16 %v634
    %v735 = vunpack.c.h.b16 %v634
    %v736 = vunpack.c.l.b16 %v635
    %v737 = vunpack.c.h.b16 %v635
    %v738 = vunpack.c.l.b16 %v636
    %v739 = vunpack.c.h.b16 %v636
    %v740 = vunpack.c.l.b16 %v637
    %v741 = vunpack.c.h.b16 %v637
    %v742 = vunpack.c.l.b16 %v638
    %v743 = vunpack.c.h.b16 %v638
    %v744 = vunpack.c.l.b16 %v639
    %v745 = vunpack.c.h.b16 %v639
    %v746 = vunpack.c.l.b16 %v640
    %v747 = vunpack.c.h.b16 %v640
    %v748 = vunpack.c.l.b16 %v641
    %v749 = vunpack.c.h.b16 %v641
    %v750 = vpack.c.b16 %v688, %v686
    %v751 = vpack.c.b16 %v689, %v687
    %v752 = vpack.c.b16 %v692, %v690
    %v753 = vpack.c.b16 %v693, %v691
    %v754 = vpack.c.b16 %v696, %v694
    %v755 = vpack.c.b16 %v697, %v695
    %v756 = vpack.c.b16 %v700, %v698
    %v757 = vpack.c.b16 %v701, %v699
    %v758 = vpack.c.b16 %v704, %v702
    %v759 = vpack.c.b16 %v705, %v703
    %v760 = vpack.c.b16 %v708, %v706
    %v761 = vpack.c.b16 %v709, %v707
    %v762 = vpack.c.b16 %v712, %v710
    %v763 = vpack.c.b16 %v713, %v711
    %v764 = vpack.c.b16 %v716, %v714
    %v765 = vpack.c.b16 %v717, %v715
    %v766 = vpack.c.b16 %v720, %v718
    %v767 = vpack.c.b16 %v721, %v719
    %v768 = vpack.c.b16 %v724, %v722
    %v769 = vpack.c.b16 %v725, %v723
    %v770 = vpack.c.b16 %v728, %v726
    %v771 = vpack.c.b16 %v729, %v727
    %v772 = vpack.c.b16 %v732, %v730
    %v773 = vpack.c.b16 %v733, %v731
    %v774 = vpack.c.b16 %v736, %v734
    %v775 = vpack.c.b16 %v737, %v735
    %v776 = vpack.c.b16 %v740, %v738
    %v777 = vpack.c.b16 %v741, %v739
    %v778 = vpack.c.b16 %v744, %v742
    %v779 = vpack.c.b16 %v745, %v743
    %v780 = vpack.c.b16 %v748, %v746
    %v781 = vpack.c.b16 %v749, %v747
    %814 = vmatprep.subr.bf16.mxu0 %v751
    %815 = vmatpush1.bf16.msra.mxu0 %v750
    %816 = vmatprep.subr.bf16.mxu0 %v753
    %817 = vmatpush1.bf16.msra.mxu0 %v752
    %818 = vmatprep.subr.bf16.mxu0 %v755
    %819 = vmatpush1.bf16.msra.mxu0 %v754
    %820 = vmatprep.subr.bf16.mxu0 %v757
    %821 = vmatpush1.bf16.msra.mxu0 %v756
    %822 = vmatprep.subr.bf16.mxu0 %v759
    %823 = vmatpush1.bf16.msra.mxu0 %v758
    %824 = vmatprep.subr.bf16.mxu0 %v761
    %825 = vmatpush1.bf16.msra.mxu0 %v760
    %826 = vmatprep.subr.bf16.mxu0 %v763
    %827 = vmatpush1.bf16.msra.mxu0 %v762
    %828 = vmatprep.subr.bf16.mxu0 %v765
    %829 = vmatpush1.bf16.msra.mxu0 %v764
    %830 = vmatprep.subr.bf16.mxu0 %v767
    %831 = vmatpush1.bf16.msra.mxu0 %v766
    %832 = vmatprep.subr.bf16.mxu0 %v769
    %833 = vmatpush1.bf16.msra.mxu0 %v768
    %834 = vmatprep.subr.bf16.mxu0 %v771
    %835 = vmatpush1.bf16.msra.mxu0 %v770
    %836 = vmatprep.subr.bf16.mxu0 %v773
    %837 = vmatpush1.bf16.msra.mxu0 %v772
    %838 = vmatprep.subr.bf16.mxu0 %v775
    %839 = vmatpush1.bf16.msra.mxu0 %v774
    %840 = vmatprep.subr.bf16.mxu0 %v777
    %841 = vmatpush1.bf16.msra.mxu0 %v776
    %842 = vmatprep.subr.bf16.mxu0 %v779
    %843 = vmatpush1.bf16.msra.mxu0 %v778
    %844 = vmatprep.subr.bf16.mxu0 %v781
    %845 = vmatpush1.bf16.msra.mxu0 %v780
    %846 = vmatprep.mubr.bf16.mxu0 %v579
    %847 = vmatmul.mubr.bf16.gmra.mrb[0].mxu0 %v578
    %v848 = vpop.f32.mrb[0].mxu0
    %v849 = vadd.f32 %v647, %v848
    %v850 = vpop.f32.mrb[0].mxu0
    %v851 = vadd.f32 %v651, %v850
    %v852 = vpop.f32.mrb[0].mxu0
    %v853 = vadd.f32 %v647, %v852
    %v854 = vpop.f32.mrb[0].mxu0
    %v855 = vadd.f32 %v651, %v854
    %856 = vmatprep.mubr.bf16.mxu0 %v581
    %857 = vmatmul.mubr.bf16.gmra.mrb[0].mxu0 %v580
    %v858 = vpop.f32.mrb[0].mxu0
    %v859 = vadd.f32 %v647, %v858
    %v860 = vpop.f32.mrb[0].mxu0
    %v861 = vadd.f32 %v651, %v860
    %v862 = vpop.f32.mrb[0].mxu0
    %v863 = vadd.f32 %v647, %v862
    %v864 = vpop.f32.mrb[0].mxu0
    %v865 = vadd.f32 %v651, %v864
    %866 = vmatprep.mubr.bf16.mxu0 %v583
    %867 = vmatmul.mubr.bf16.gmra.mrb[0].mxu0 %v582
    %v868 = vpop.f32.mrb[0].mxu0
    %v869 = vadd.f32 %v647, %v868
    %v870 = vpop.f32.mrb[0].mxu0
    %v871 = vadd.f32 %v651, %v870
    %v872 = vpop.f32.mrb[0].mxu0
    %v873 = vadd.f32 %v647, %v872
    %v874 = vpop.f32.mrb[0].mxu0
    %v875 = vadd.f32 %v651, %v874
    %876 = vmatprep.mubr.bf16.mxu0 %v585
    %877 = vmatmul.mubr.bf16.gmra.mrb[0].mxu0 %v584
    %v878 = vpop.f32.mrb[0].mxu0
    %v879 = vadd.f32 %v647, %v878
    %v880 = vpop.f32.mrb[0].mxu0
    %v881 = vadd.f32 %v651, %v880
    %v882 = vpop.f32.mrb[0].mxu0
    %v883 = vadd.f32 %v647, %v882
    %v884 = vpop.f32.mrb[0].mxu0
    %v885 = vadd.f32 %v651, %v884
    %886 = vmatprep.mubr.bf16.mxu0 %v587
    %887 = vmatmul.mubr.bf16.gmra.mrb[0].mxu0 %v586
    %v888 = vpop.f32.mrb[0].mxu0
    %v889 = vadd.f32 %v647, %v888
    %v890 = vpop.f32.mrb[0].mxu0
    %v891 = vadd.f32 %v651, %v890
    %v892 = vpop.f32.mrb[0].mxu0
    %v893 = vadd.f32 %v647, %v892
    %v894 = vpop.f32.mrb[0].mxu0
    %v895 = vadd.f32 %v651, %v894
    %896 = vmatprep.mubr.bf16.mxu0 %v589
    %897 = vmatmul.mubr.bf16.gmra.mrb[0].mxu0 %v588
    %v898 = vpop.f32.mrb[0].mxu0
    %v899 = vadd.f32 %v647, %v898
    %v900 = vpop.f32.mrb[0].mxu0
    %v901 = vadd.f32 %v651, %v900
    %v902 = vpop.f32.mrb[0].mxu0
    %v903 = vadd.f32 %v647, %v902
    %v904 = vpop.f32.mrb[0].mxu0
    %v905 = vadd.f32 %v651, %v904
    %906 = vmatprep.mubr.bf16.mxu0 %v591
    %907 = vmatmul.mubr.bf16.gmra.mrb[0].mxu0 %v590
    %v908 = vpop.f32.mrb[0].mxu0
    %v909 = vadd.f32 %v647, %v908
    %v910 = vpop.f32.mrb[0].mxu0
    %v911 = vadd.f32 %v651, %v910
    %v912 = vpop.f32.mrb[0].mxu0
    %v913 = vadd.f32 %v647, %v912
    %v914 = vpop.f32.mrb[0].mxu0
    %v915 = vadd.f32 %v651, %v914
    %916 = vmatprep.mubr.bf16.mxu0 %v593
    %917 = vmatmul.mubr.bf16.gmra.mrb[0].mxu0 %v592
    %v918 = vpop.f32.mrb[0].mxu0
    %v919 = vadd.f32 %v647, %v918
    %v920 = vpop.f32.mrb[0].mxu0
    %v921 = vadd.f32 %v651, %v920
    %v922 = vpop.f32.mrb[0].mxu0
    %v923 = vadd.f32 %v647, %v922
    %v924 = vpop.f32.mrb[0].mxu0
    %v925 = vadd.f32 %v651, %v924
    %926 = vmatprep.mubr.bf16.mxu0 %v595
    %927 = vmatmul.mubr.bf16.gmra.mrb[0].mxu0 %v594
    %v928 = vpop.f32.mrb[0].mxu0
    %v929 = vadd.f32 %v647, %v928
    %v930 = vpop.f32.mrb[0].mxu0
    %v931 = vadd.f32 %v651, %v930
    %v932 = vpop.f32.mrb[0].mxu0
    %v933 = vadd.f32 %v647, %v932
    %v934 = vpop.f32.mrb[0].mxu0
    %v935 = vadd.f32 %v651, %v934
    %936 = vmatprep.mubr.bf16.mxu0 %v597
    %937 = vmatmul.mubr.bf16.gmra.mrb[0].mxu0 %v596
    %v938 = vpop.f32.mrb[0].mxu0
    %v939 = vadd.f32 %v647, %v938
    %v940 = vpop.f32.mrb[0].mxu0
    %v941 = vadd.f32 %v651, %v940
    %v942 = vpop.f32.mrb[0].mxu0
    %v943 = vadd.f32 %v647, %v942
    %v944 = vpop.f32.mrb[0].mxu0
    %v945 = vadd.f32 %v651, %v944
    %946 = vmatprep.mubr.bf16.mxu0 %v599
    %947 = vmatmul.mubr.bf16.gmra.mrb[0].mxu0 %v598
    %v948 = vpop.f32.mrb[0].mxu0
    %v949 = vadd.f32 %v647, %v948
    %v950 = vpop.f32.mrb[0].mxu0
    %v951 = vadd.f32 %v651, %v950
    %v952 = vpop.f32.mrb[0].mxu0
    %v953 = vadd.f32 %v647, %v952
    %v954 = vpop.f32.mrb[0].mxu0
    %v955 = vadd.f32 %v651, %v954
    %956 = vmatprep.mubr.bf16.mxu0 %v601
    %957 = vmatmul.mubr.bf16.gmra.mrb[0].mxu0 %v600
    %v958 = vpop.f32.mrb[0].mxu0
    %v959 = vadd.f32 %v647, %v958
    %v960 = vpop.f32.mrb[0].mxu0
    %v961 = vadd.f32 %v651, %v960
    %v962 = vpop.f32.mrb[0].mxu0
    %v963 = vadd.f32 %v647, %v962
    %v964 = vpop.f32.mrb[0].mxu0
    %v965 = vadd.f32 %v651, %v964
    %966 = vmatprep.mubr.bf16.mxu0 %v603
    %967 = vmatmul.mubr.bf16.gmra.mrb[0].mxu0 %v602
    %v968 = vpop.f32.mrb[0].mxu0
    %v969 = vadd.f32 %v647, %v968
    %v970 = vpop.f32.mrb[0].mxu0
    %v971 = vadd.f32 %v651, %v970
    %v972 = vpop.f32.mrb[0].mxu0
    %v973 = vadd.f32 %v647, %v972
    %v974 = vpop.f32.mrb[0].mxu0
    %v975 = vadd.f32 %v651, %v974
    %976 = vmatprep.mubr.bf16.mxu0 %v605
    %977 = vmatmul.mubr.bf16.gmra.mrb[0].mxu0 %v604
    %v978 = vpop.f32.mrb[0].mxu0
    %v979 = vadd.f32 %v647, %v978
    %v980 = vpop.f32.mrb[0].mxu0
    %v981 = vadd.f32 %v651, %v980
    %v982 = vpop.f32.mrb[0].mxu0
    %v983 = vadd.f32 %v647, %v982
    %v984 = vpop.f32.mrb[0].mxu0
    %v985 = vadd.f32 %v651, %v984
    %986 = vmatprep.mubr.bf16.mxu0 %v607
    %987 = vmatmul.mubr.bf16.gmra.mrb[0].mxu0 %v606
    %v988 = vpop.f32.mrb[0].mxu0
    %v989 = vadd.f32 %v647, %v988
    %v990 = vpop.f32.mrb[0].mxu0
    %v991 = vadd.f32 %v651, %v990
    %v992 = vpop.f32.mrb[0].mxu0
    %v993 = vadd.f32 %v647, %v992
    %v994 = vpop.f32.mrb[0].mxu0
    %v995 = vadd.f32 %v651, %v994
    %996 = vmatprep.mubr.bf16.mxu0 %v609
    %997 = vmatmul.mubr.bf16.gmra.mrb[0].mxu0 %v608
    %v998 = vpop.f32.mrb[0].mxu0
    %v999 = vadd.f32 %v647, %v998
    %v1000 = vpop.f32.mrb[0].mxu0
    %v1001 = vadd.f32 %v651, %v1000
    %v1002 = vpop.f32.mrb[0].mxu0
    %v1003 = vadd.f32 %v647, %v1002
    %v1004 = vpop.f32.mrb[0].mxu0
    %v1005 = vadd.f32 %v651, %v1004
    %1006 = vdwg.mxu0
    %v1007 = vpack.c.bf16 %v853, %v849
    %v1008 = vpack.c.bf16 %v855, %v851
    %v1009 = vpack.c.bf16 %v863, %v859
    %v1010 = vpack.c.bf16 %v865, %v861
    %v1011 = vpack.c.bf16 %v873, %v869
    %v1012 = vpack.c.bf16 %v875, %v871
    %v1013 = vpack.c.bf16 %v883, %v879
    %v1014 = vpack.c.bf16 %v885, %v881
    %v1015 = vpack.c.bf16 %v893, %v889
    %v1016 = vpack.c.bf16 %v895, %v891
    %v1017 = vpack.c.bf16 %v903, %v899
    %v1018 = vpack.c.bf16 %v905, %v901
    %v1019 = vpack.c.bf16 %v913, %v909
    %v1020 = vpack.c.bf16 %v915, %v911
    %v1021 = vpack.c.bf16 %v923, %v919
    %v1022 = vpack.c.bf16 %v925, %v921
    %v1023 = vpack.c.bf16 %v933, %v929
    %v1024 = vpack.c.bf16 %v935, %v931
    %v1025 = vpack.c.bf16 %v943, %v939
    %v1026 = vpack.c.bf16 %v945, %v941
    %v1027 = vpack.c.bf16 %v953, %v949
    %v1028 = vpack.c.bf16 %v955, %v951
    %v1029 = vpack.c.bf16 %v963, %v959
    %v1030 = vpack.c.bf16 %v965, %v961
    %v1031 = vpack.c.bf16 %v973, %v969
    %v1032 = vpack.c.bf16 %v975, %v971
    %v1033 = vpack.c.bf16 %v983, %v979
    %v1034 = vpack.c.bf16 %v985, %v981
    %v1035 = vpack.c.bf16 %v993, %v989
    %v1036 = vpack.c.bf16 %v995, %v991
    %v1037 = vpack.c.bf16 %v1003, %v999
    %v1038 = vpack.c.bf16 %v1005, %v1001
    %v1071 = vunpack.c.l.b16 %v1007
    %v1072 = vunpack.c.l.b16 %v1008
    %v1073 = vunpack.c.h.b16 %v1007
    %v1074 = vunpack.c.h.b16 %v1008
    %v1075 = vunpack.c.l.b16 %v1009
    %v1076 = vunpack.c.l.b16 %v1010
    %v1077 = vunpack.c.h.b16 %v1009
    %v1078 = vunpack.c.h.b16 %v1010
    %v1079 = vunpack.c.l.b16 %v1011
    %v1080 = vunpack.c.l.b16 %v1012
    %v1081 = vunpack.c.h.b16 %v1011
    %v1082 = vunpack.c.h.b16 %v1012
    %v1083 = vunpack.c.l.b16 %v1013
    %v1084 = vunpack.c.l.b16 %v1014
    %v1085 = vunpack.c.h.b16 %v1013
    %v1086 = vunpack.c.h.b16 %v1014
    %v1087 = vunpack.c.l.b16 %v1015
    %v1088 = vunpack.c.l.b16 %v1016
    %v1089 = vunpack.c.h.b16 %v1015
    %v1090 = vunpack.c.h.b16 %v1016
    %v1091 = vunpack.c.l.b16 %v1017
    %v1092 = vunpack.c.l.b16 %v1018
    %v1093 = vunpack.c.h.b16 %v1017
    %v1094 = vunpack.c.h.b16 %v1018
    %v1095 = vunpack.c.l.b16 %v1019
    %v1096 = vunpack.c.l.b16 %v1020
    %v1097 = vunpack.c.h.b16 %v1019
    %v1098 = vunpack.c.h.b16 %v1020
    %v1099 = vunpack.c.l.b16 %v1021
    %v1100 = vunpack.c.l.b16 %v1022
    %v1101 = vunpack.c.h.b16 %v1021
    %v1102 = vunpack.c.h.b16 %v1022
    %v1103 = vunpack.c.l.b16 %v1023
    %v1104 = vunpack.c.l.b16 %v1024
    %v1105 = vunpack.c.h.b16 %v1023
    %v1106 = vunpack.c.h.b16 %v1024
    %v1107 = vunpack.c.l.b16 %v1025
    %v1108 = vunpack.c.l.b16 %v1026
    %v1109 = vunpack.c.h.b16 %v1025
    %v1110 = vunpack.c.h.b16 %v1026
    %v1111 = vunpack.c.l.b16 %v1027
    %v1112 = vunpack.c.l.b16 %v1028
    %v1113 = vunpack.c.h.b16 %v1027
    %v1114 = vunpack.c.h.b16 %v1028
    %v1115 = vunpack.c.l.b16 %v1029
    %v1116 = vunpack.c.l.b16 %v1030
    %v1117 = vunpack.c.h.b16 %v1029
    %v1118 = vunpack.c.h.b16 %v1030
    %v1119 = vunpack.c.l.b16 %v1031
    %v1120 = vunpack.c.l.b16 %v1032
    %v1121 = vunpack.c.h.b16 %v1031
    %v1122 = vunpack.c.h.b16 %v1032
    %v1123 = vunpack.c.l.b16 %v1033
    %v1124 = vunpack.c.l.b16 %v1034
    %v1125 = vunpack.c.h.b16 %v1033
    %v1126 = vunpack.c.h.b16 %v1034
    %v1127 = vunpack.c.l.b16 %v1035
    %v1128 = vunpack.c.l.b16 %v1036
    %v1129 = vunpack.c.h.b16 %v1035
    %v1130 = vunpack.c.h.b16 %v1036
    %v1131 = vunpack.c.l.b16 %v1037
    %v1132 = vunpack.c.l.b16 %v1038
    %v1133 = vunpack.c.h.b16 %v1037
    %v1134 = vunpack.c.h.b16 %v1038
    %v1135 = vpack.c.b16 %v1072, %v1071
    %v1136 = vpack.c.b16 %v1074, %v1073
    %v1137 = vpack.c.b16 %v1076, %v1075
    %v1138 = vpack.c.b16 %v1078, %v1077
    %v1139 = vpack.c.b16 %v1080, %v1079
    %v1140 = vpack.c.b16 %v1082, %v1081
    %v1141 = vpack.c.b16 %v1084, %v1083
    %v1142 = vpack.c.b16 %v1086, %v1085
    %v1143 = vpack.c.b16 %v1088, %v1087
    %v1144 = vpack.c.b16 %v1090, %v1089
    %v1145 = vpack.c.b16 %v1092, %v1091
    %v1146 = vpack.c.b16 %v1094, %v1093
    %v1147 = vpack.c.b16 %v1096, %v1095
    %v1148 = vpack.c.b16 %v1098, %v1097
    %v1149 = vpack.c.b16 %v1100, %v1099
    %v1150 = vpack.c.b16 %v1102, %v1101
    %v1151 = vpack.c.b16 %v1104, %v1103
    %v1152 = vpack.c.b16 %v1106, %v1105
    %v1153 = vpack.c.b16 %v1108, %v1107
    %v1154 = vpack.c.b16 %v1110, %v1109
    %v1155 = vpack.c.b16 %v1112, %v1111
    %v1156 = vpack.c.b16 %v1114, %v1113
    %v1157 = vpack.c.b16 %v1116, %v1115
    %v1158 = vpack.c.b16 %v1118, %v1117
    %v1159 = vpack.c.b16 %v1120, %v1119
    %v1160 = vpack.c.b16 %v1122, %v1121
    %v1161 = vpack.c.b16 %v1124, %v1123
    %v1162 = vpack.c.b16 %v1126, %v1125
    %v1163 = vpack.c.b16 %v1128, %v1127
    %v1164 = vpack.c.b16 %v1130, %v1129
    %v1165 = vpack.c.b16 %v1132, %v1131
    %v1166 = vpack.c.b16 %v1134, %v1133
    %1199 = vst [vmem:[#allocation2] sm:$0xff] %v1135
    %1200 = vst [vmem:[#allocation2 + $0x8] sm:$0xff] %v1136
    %1201 = vst [vmem:[#allocation2 + $0x10] sm:$0xff] %v1137
    %1202 = vst [vmem:[#allocation2 + $0x18] sm:$0xff] %v1138
    %1203 = vst [vmem:[#allocation2 + $0x20] sm:$0xff] %v1139
    %1204 = vst [vmem:[#allocation2 + $0x28] sm:$0xff] %v1140
    %1205 = vst [vmem:[#allocation2 + $0x30] sm:$0xff] %v1141
    %1206 = vst [vmem:[#allocation2 + $0x38] sm:$0xff] %v1142
    %1207 = vst [vmem:[#allocation2 + $0x40] sm:$0xff] %v1143
    %1208 = vst [vmem:[#allocation2 + $0x48] sm:$0xff] %v1144
    %1209 = vst [vmem:[#allocation2 + $0x50] sm:$0xff] %v1145
    %1210 = vst [vmem:[#allocation2 + $0x58] sm:$0xff] %v1146
    %1211 = vst [vmem:[#allocation2 + $0x60] sm:$0xff] %v1147
    %1212 = vst [vmem:[#allocation2 + $0x68] sm:$0xff] %v1148
    %1213 = vst [vmem:[#allocation2 + $0x70] sm:$0xff] %v1149
    %1214 = vst [vmem:[#allocation2 + $0x78] sm:$0xff] %v1150
    %1215 = vst [vmem:[#allocation2 + $0x80] sm:$0xff] %v1151
    %1216 = vst [vmem:[#allocation2 + $0x88] sm:$0xff] %v1152
    %1217 = vst [vmem:[#allocation2 + $0x90] sm:$0xff] %v1153
    %1218 = vst [vmem:[#allocation2 + $0x98] sm:$0xff] %v1154
    %1219 = vst [vmem:[#allocation2 + $0xa0] sm:$0xff] %v1155
    %1220 = vst [vmem:[#allocation2 + $0xa8] sm:$0xff] %v1156
    %1221 = vst [vmem:[#allocation2 + $0xb0] sm:$0xff] %v1157
    %1222 = vst [vmem:[#allocation2 + $0xb8] sm:$0xff] %v1158
    %1223 = vst [vmem:[#allocation2 + $0xc0] sm:$0xff] %v1159
    %1224 = vst [vmem:[#allocation2 + $0xc8] sm:$0xff] %v1160
    %1225 = vst [vmem:[#allocation2 + $0xd0] sm:$0xff] %v1161
    %1226 = vst [vmem:[#allocation2 + $0xd8] sm:$0xff] %v1162
    %1227 = vst [vmem:[#allocation2 + $0xe0] sm:$0xff] %v1163
    %1228 = vst [vmem:[#allocation2 + $0xe8] sm:$0xff] %v1164
    %1229 = vst [vmem:[#allocation2 + $0xf0] sm:$0xff] %v1165
    %1230 = vst [vmem:[#allocation2 + $0xf8] sm:$0xff] %v1166
    // Predicated region
    $region22: #{classifier_forward.1} parent=1 // pred_check
      _
    $region23: #{classifier_forward.1} parent=1 // pred_check_branch
      %1232 = sbr.rel (0) target = $region25
    $region24: #{classifier_forward.1} parent=1 // pred_region
      %s1234 = ssub.s32 4096, 4096
      %1235 = vsyncadd [#allocation3], %s1234
      %s1236 = sshll.u32 [#allocation2], 4
      %s1237 = int_to_ptr.vmem [resolvable:$true] %s1236
      %1242 = dma.vmem_to_hbm [thread:$0]  %s1237, 4096, %s5, [#allocation3], 128, 128, 8
    $region25: #{classifier_forward.1} parent=1 // pred_fallthru
      _
    // Predicated region
    $region26: #{classifier_forward.1} parent=1 // pred_check
      _
    $region27: #{classifier_forward.1} parent=1 // pred_check_branch
      %1244 = sbr.rel (0) target = $region29
    $region28: #{classifier_forward.1} parent=1 // pred_region
      %1245 = dma.done [#allocation3], 4096
    $region29: #{classifier_forward.1} parent=1 // pred_fallthru
      _
    %1246 = vsyncpa [#allocation3], 1

</llo_original>
